<compile_context>
chip_gen: v7x
topology: tpu7x:2x2x1
jax: 0.10.0
libtpu: 0.0.40
codegen_flags: <defaults>
</compile_context>

<pallas_src>
import jax
import jax.numpy as jnp
from jax.experimental import pallas as pl
from jax.experimental.pallas import tpu as pltpu


def _cdiv(a: int, b: int) -> int:
    return (a + b - 1) // b


def _round_up(a: int, b: int) -> int:
    return _cdiv(a, b) * b


def _vmem_capacity_bytes() -> int:
    try:
        info = pltpu.get_tpu_info()
        cap = int(getattr(info, "vmem_capacity_bytes", 0) or 0)
        if cap > 0:
            return cap
    except Exception:
        pass
    return 128 * 1024 * 1024


def _auto_num_shards() -> int:
    """2 on dual-TensorCore / megacore chips (the 'parallel' shard axis is what
    actually uses the second core); 1 on single-TC chips (v5e / v6e)."""
    try:
        kind = jax.devices()[0].device_kind.lower()
    except Exception:
        return 1
    for tag in ("v4", "v5p", "v7", "7x"):
        if tag in kind:
            return 2
    return 1


def _make_kernel(*, class_ids, sel_slice, use_sigmoid, tile_n, n_pix,
                 tiles_per_shard, has_ragged):
    """class_ids : original class ids (block-channel order) for the one-hot compare
       sel_slice : (lo, hi) static channel slice into the streamed block
       n_pix     : true pixel count N (for ragged-lane masking)"""
    K = len(class_ids)

    def _partials(xs, lab, lane_mask):
        """xs: (B,T) [sigmoid] or (B,K,T) f32 logits; lab: (B,T) mask / labels.
        Returns per-tile (inter, sum_p, sum_t) partial sums (tiny, lane-reduced)."""
        if use_sigmoid:
            p = jax.nn.sigmoid(xs)                                  # (B, T)
            tgt = lab
            if lane_mask is not None:
                # where() also scrubs NaN garbage in the out-of-range lanes.
                p = jnp.where(lane_mask, p, 0.0)
                tgt = jnp.where(lane_mask, tgt, 0.0)
            inter = jnp.sum(p * tgt, axis=1, keepdims=True)          # (B, 1)
            sum_p = jnp.sum(p, axis=1, keepdims=True)
            sum_t = jnp.sum(tgt, axis=1, keepdims=True)
        else:
            # Numerically-stable softmax over the selected-class (sublane) axis.
            m = jnp.max(xs, axis=1, keepdims=True)                   # (B, 1, T)
            e = jnp.exp(xs - m)
            s = jnp.sum(e, axis=1, keepdims=True)
            p = e * pl.reciprocal(s, approx=False)                   # (B, K, T)
            # One-hot of the ORIGINAL class ids (no wrapper-side remap).  The
            # (1, K, 1) id vector is built from iota + scalar selects so only
            # guaranteed-lowerable primitives are used.
            kidx = jax.lax.broadcasted_iota(jnp.int32, (1, K, 1), 1)
            cls = jnp.zeros((1, K, 1), jnp.int32)
            for k, cid in enumerate(class_ids):
                cls = jnp.where(kidx == k, jnp.int32(cid), cls)
            onehot = lab[:, None, :] == cls                          # (B, K, T)
            if lane_mask is not None:
                mask3 = lane_mask[:, None, :]
                p = jnp.where(mask3, p, 0.0)      # scrubs NaN garbage lanes too
                onehot = jnp.logical_and(onehot, mask3)
            tgt = onehot.astype(jnp.float32)
            inter = jnp.sum(p * tgt, axis=2)                         # (B, K)
            sum_p = jnp.sum(p, axis=2)
            sum_t = jnp.sum(tgt, axis=2)
        return inter, sum_p, sum_t

    def kernel(x_ref, lab_ref, inter_ref, sump_ref, sumt_ref):
        s_id = pl.program_id(0)
        t_id = pl.program_id(1)

        # Per-shard accumulator init: outputs stay VMEM-resident across the
        # tile axis (out index_map ignores t) and are written back automatically.
        @pl.when(t_id == 0)
        def _init():
            inter_ref[...] = jnp.zeros_like(inter_ref)
            sump_ref[...] = jnp.zeros_like(sump_ref)
            sumt_ref[...] = jnp.zeros_like(sumt_ref)

        # Static channel selection out of the streamed block (zero-copy for the
        # full / contiguous-subset cases).
        if use_sigmoid:
            xs = x_ref[...].astype(jnp.float32)                      # (B, T)
            lab = lab_ref[...].astype(jnp.float32)                   # float mask
        else:
            lo, hi = sel_slice
            if (lo, hi) == (0, x_ref.shape[1]):
                xs = x_ref[...].astype(jnp.float32)                  # (B, K, T)
            else:
                xs = x_ref[:, lo:hi, :].astype(jnp.float32)          # (B, K, T)
            lab = lab_ref[...]                                       # (B, T) int32

        def _acc(lane_mask):
            i_p, p_p, t_p = _partials(xs, lab, lane_mask)
            inter_ref[0] += i_p
            sump_ref[0] += p_p
            sumt_ref[0] += t_p

        if not has_ragged:
            _acc(None)
        else:
            g = s_id * tiles_per_shard + t_id          # global tile index
            n_rem = n_pix - g * tile_n                 # valid lanes (may be <= 0)
            is_full = n_rem >= tile_n

            @pl.when(is_full)
            def _full_tile():
                _acc(None)

            @pl.when(jnp.logical_not(is_full))
            def _ragged_tile():
                lane = jax.lax.broadcasted_iota(jnp.int32, (1, tile_n), 1)
                _acc(lane < n_rem)

    return kernel


def select_class_soft_dice_loss(logits, target, n_classes, class_ids, *,
                                smooth=0.01, tile_n=None, num_shards=None):
    """logits: (B, C, H, W); target: (B, H, W) int labels (or float mask when
    len(class_ids) == 1).  Returns the scalar loss (PyTorch-equivalent)."""
    B, C, H, W = logits.shape
    assert C == n_classes
    class_ids = tuple(int(c) for c in class_ids)
    K = len(class_ids)
    use_sigmoid = (K == 1)
    N = H * W

    x = logits.reshape(B, C, N)                 # metadata-only reshape (no copy)

    # --- labels ---------------------------------------------------------------
    if use_sigmoid:
        lab = target.reshape(B, N).astype(jnp.float32)       # float mask, as-is
    else:
        lab = target.reshape(B, N).astype(jnp.int32)
        # TODO(synk): labels assumed in [0, n_classes) like the PyTorch
        # One_Hot index_select; no ignore_index handling.

    # --- how logits reach the kernel (avoid extra HBM passes where possible) --
    if use_sigmoid:
        # TODO(synk): single-channel slice is one small XLA copy; a squeezed
        # channel BlockSpec could fuse it entirely.
        x_in = x[:, class_ids[0], :]                          # (B, N)
        sel_slice = (0, 1)
        c_in = 1
    else:
        lo = min(class_ids)
        contiguous = class_ids == tuple(range(lo, lo + K))
        if contiguous and C <= 3 * K:
            x_in = x                                          # zero extra passes
            sel_slice = (lo, lo + K)
            c_in = C
        elif contiguous:
            # K << C: one contiguous slice pass beats streaming all C channels.
            x_in = x[:, lo:lo + K, :]
            sel_slice = (0, K)
            c_in = K
        else:
            # TODO(synk): non-contiguous subsets fall back to one XLA gather
            # pass; fully fusing it needs per-channel DMA or sublane concat.
            x_in = x[:, jnp.asarray(class_ids, dtype=jnp.int32), :]
            sel_slice = (0, K)
            c_in = K

    # --- generation-aware VMEM budget & tile sizing ----------------------------
    vmem_cap = _vmem_capacity_bytes()
    budget = min(vmem_cap * 3 // 8, 48 * 1024 * 1024)   # v7x: ~24 MiB, others: 48 MiB
    vmem_limit = min(vmem_cap // 2, 96 * 1024 * 1024)   # v7x: 32 MiB, others: 64 MiB

    if num_shards is None:
        num_shards = _auto_num_shards()
    num_shards = max(1, int(num_shards))

    xb = jnp.dtype(x_in.dtype).itemsize
    pack = max(1, 4 // xb)                      # sublane packing of narrow dtypes
    if use_sigmoid:
        stream_rows = _round_up(B, 8 * pack)
        interm_rows = 4 * _round_up(B, 8)                 # f32 temporaries
    else:
        stream_rows = B * _round_up(c_in, 8 * pack)
        interm_rows = 5 * B * _round_up(K, 8)             # f32 temporaries
    bytes_per_lane = (2 * stream_rows * xb                # double-buffered logits
                      + 2 * _round_up(B, 8) * 4           # double-buffered labels
                      + interm_rows * 4)                  # in-kernel temporaries
    budget_tile = max(128, (budget // bytes_per_lane) // 128 * 128)

    if tile_n is None:
        tile_n = min(budget_tile, 32768,
                     _round_up(_cdiv(N, num_shards), 128))
    else:
        tile_n = max(128, _round_up(int(tile_n), 128))
    if tile_n >= N:
        tile_n = N                              # single, exactly-sized tile

    n_tiles = _cdiv(N, tile_n)
    shards = max(1, min(num_shards, n_tiles))
    tps = _cdiv(n_tiles, shards)
    has_phantom = shards * tps > n_tiles        # trailing fully-out-of-range tiles
    has_ragged = (N % tile_n != 0) or has_phantom

    last_tile = n_tiles - 1

    def _nb(s, t):
        g = s * tps + t
        return jnp.minimum(g, last_tile) if has_phantom else g

    if use_sigmoid:
        x_spec = pl.BlockSpec((B, tile_n), lambda s, t: (0, _nb(s, t)))
    else:
        x_spec = pl.BlockSpec((B, c_in, tile_n), lambda s, t: (0, 0, _nb(s, t)))
    lab_spec = pl.BlockSpec((B, tile_n), lambda s, t: (0, _nb(s, t)))

    out_k = 1 if use_sigmoid else K
    out_shape = jax.ShapeDtypeStruct((shards, B, out_k), jnp.float32)
    out_spec = pl.BlockSpec((1, B, out_k), lambda s, t: (s, 0, 0))

    kernel = _make_kernel(class_ids=class_ids, sel_slice=sel_slice,
                          use_sigmoid=use_sigmoid, tile_n=tile_n, n_pix=N,
                          tiles_per_shard=tps, has_ragged=has_ragged)

    grid_spec = pltpu.PrefetchScalarGridSpec(
        num_scalar_prefetch=0,
        grid=(shards, tps),
        in_specs=[x_spec, lab_spec],
        out_specs=(out_spec, out_spec, out_spec),
    )

    x_stream_bytes = x_in.size * xb
    lab_bytes = lab.size * jnp.dtype(lab.dtype).itemsize
    cost = pl.CostEstimate(
        flops=int(6 * B * K * N + 2 * B * N),
        transcendentals=int(B * K * N),
        bytes_accessed=int(x_stream_bytes + lab_bytes + 3 * shards * B * out_k * 4),
    )

    inter_p, sump_p, sumt_p = pl.pallas_call(
        kernel,
        out_shape=(out_shape, out_shape, out_shape),
        grid_spec=grid_spec,
        compiler_params=pltpu.CompilerParams(
            dimension_semantics=("parallel", "arbitrary"),
            vmem_limit_bytes=int(vmem_limit)),
        cost_estimate=cost,
    )(x_in, lab)

    # Tiny finalization on the per-shard (B, K) partials (kept outside the
    # kernel so the shard axis stays fully parallel).
    inter = jnp.sum(inter_p, axis=0) + smooth
    union = jnp.sum(sump_p, axis=0) + jnp.sum(sumt_p, axis=0) + smooth
    score = jnp.sum(2.0 * inter / union)
    return 1.0 - score / (float(B) * float(K))


def _reference_select_class_soft_dice_loss(logits, target, n_classes, class_ids):
    """Pure-JAX mirror of the PyTorch forward (for validation)."""
    smooth = 0.01
    B = logits.shape[0]
    K = len(class_ids)
    ids = jnp.asarray(class_ids, dtype=jnp.int32)
    if K == 1:
        p = jax.nn.sigmoid(logits[:, ids].astype(jnp.float32)).reshape(B, 1, -1)
        t = target.reshape(B, 1, -1).astype(jnp.float32)
    else:
        p = jax.nn.softmax(logits[:, ids].astype(jnp.float32), axis=1)
        p = p.reshape(B, K, -1)
        t = jax.nn.one_hot(target.astype(jnp.int32), n_classes,
                           dtype=jnp.float32)                    # (B, H, W, C)
        t = jnp.transpose(t, (0, 3, 1, 2))[:, ids].reshape(B, K, -1)
    inter = jnp.sum(p * t, axis=2) + smooth
    union = jnp.sum(p, axis=2) + jnp.sum(t, axis=2) + smooth
    score = jnp.sum(2.0 * inter / union)
    return 1.0 - score / (float(B) * float(K))


if __name__ == "__main__":
    key = jax.random.PRNGKey(0)
    k1, k2, k3, k4 = jax.random.split(key, 4)

    B, C, H, W = 2, 4, 16, 16
    logits = jax.random.normal(k1, (B, C, H, W), dtype=jnp.float32)
    labels = jax.random.randint(k2, (B, H, W), 0, C, dtype=jnp.int32)

    # 1) multi-class: all classes (zero-copy), contiguous subset (zero-copy
    #    in-kernel slice), non-contiguous subset (gather fallback).
    for ids in [(0, 1, 2, 3), (1, 2, 3), (1, 3)]:
        out = jax.block_until_ready(
            select_class_soft_dice_loss(logits, labels, C, ids))
        ref = _reference_select_class_soft_dice_loss(logits, labels, C, ids)
        assert jnp.allclose(out, ref, atol=5e-5, rtol=5e-5), (ids, out, ref)

    # 2) multi-tile grid: ragged last tile + phantom tile with 2 forced shards.
    H2 = W2 = 40                                              # N = 1600
    logits2 = jax.random.normal(k3, (B, C, H2, W2), dtype=jnp.float32)
    labels2 = jax.random.randint(k4, (B, H2, W2), 0, C, dtype=jnp.int32)
    out2 = jax.block_until_ready(
        select_class_soft_dice_loss(logits2, labels2, C, (0, 2),
                                    tile_n=640, num_shards=2))
    ref2 = _reference_select_class_soft_dice_loss(logits2, labels2, C, (0, 2))
    assert jnp.allclose(out2, ref2, atol=5e-5, rtol=5e-5), (out2, ref2)

    # 2b) bf16 logits streamed straight through the kernel (no wrapper cast).
    out2b = jax.block_until_ready(
        select_class_soft_dice_loss(logits2.astype(jnp.bfloat16), labels2, C,
                                    (0, 1, 2, 3), tile_n=512))
    ref2b = _reference_select_class_soft_dice_loss(
        logits2.astype(jnp.bfloat16), labels2, C, (0, 1, 2, 3))
    assert jnp.allclose(out2b, ref2b, atol=1e-4, rtol=1e-4), (out2b, ref2b)

    # 3) single-class sigmoid path (target used directly as a float mask).
    mask = (labels == 2).astype(jnp.float32)
    out3 = jax.block_until_ready(
        select_class_soft_dice_loss(logits, mask, C, (2,)))
    ref3 = _reference_select_class_soft_dice_loss(logits, mask, C, (2,))
    assert jnp.allclose(out3, ref3, atol=5e-5, rtol=5e-5), (out3, ref3)

    # 3b) sigmoid path with ragged + phantom tiles and 2 forced shards.
    mask2 = (labels2 == 1).astype(jnp.float32)
    out3b = jax.block_until_ready(
        select_class_soft_dice_loss(logits2, mask2, C, (1,),
                                    tile_n=640, num_shards=2))
    ref3b = _reference_select_class_soft_dice_loss(logits2, mask2, C, (1,))
    assert jnp.allclose(out3b, ref3b, atol=5e-5, rtol=5e-5), (out3b, ref3b)

    print("KERNEL_OK")
</pallas_src>

<mosaic_0001>
module attributes {stable_mosaic.version = 11 : i64} {
  func.func @kernel(%arg0: i32, %arg1: i32, %arg2: memref<2x4x256xf32, #tpu.memory_space<vmem>>, %arg3: memref<2x256xi32, #tpu.memory_space<vmem>>, %arg4: memref<1x2x4xf32, #tpu.memory_space<vmem>>, %arg5: memref<1x2x4xf32, #tpu.memory_space<vmem>>, %arg6: memref<1x2x4xf32, #tpu.memory_space<vmem>>) attributes {dimension_semantics = [#tpu.dimension_semantics<parallel>, #tpu.dimension_semantics<arbitrary>], iteration_bounds = array<i64: 1, 1>, scalar_prefetch = 0 : i64, scratch_operands = 0 : i64, tpu.core_type = #tpu.core_type<tc>, window_params = [{transform_indices = @transform_0, window_bounds = array<i64: 2, 4, 256>}, {transform_indices = @transform_1, window_bounds = array<i64: 2, 256>}, {transform_indices = @transform_2, window_bounds = array<i64: 1, 2, 4>}, {transform_indices = @transform_3, window_bounds = array<i64: 1, 2, 4>}, {transform_indices = @transform_4, window_bounds = array<i64: 1, 2, 4>}]} {
    %c0_i32 = arith.constant 0 : i32
    %0 = arith.cmpi eq, %arg1, %c0_i32 : i32
    %1 = arith.extui %0 : i1 to i32
    %c0_i32_0 = arith.constant 0 : i32
    %2 = arith.cmpi ne, %1, %c0_i32_0 : i32
    scf.if %2 {
      %cst_33 = arith.constant 0.000000e+00 : f32
      %61 = vector.broadcast %cst_33 : f32 to vector<1x2x4xf32>
      %c0_34 = arith.constant 0 : index
      %c0_35 = arith.constant 0 : index
      %c0_36 = arith.constant 0 : index
      %62 = vector.load %arg4[%c0_34, %c0_35, %c0_36] : memref<1x2x4xf32, #tpu.memory_space<vmem>>, vector<1x2x4xf32>
      tpu.vector_store %arg4[%c0_34, %c0_35, %c0_36], %61 {strides = array<i32>} : memref<1x2x4xf32, #tpu.memory_space<vmem>>, vector<1x2x4xf32>,
      %cst_37 = arith.constant 0.000000e+00 : f32
      %63 = vector.broadcast %cst_37 : f32 to vector<1x2x4xf32>
      %c0_38 = arith.constant 0 : index
      %c0_39 = arith.constant 0 : index
      %c0_40 = arith.constant 0 : index
      %64 = vector.load %arg5[%c0_38, %c0_39, %c0_40] : memref<1x2x4xf32, #tpu.memory_space<vmem>>, vector<1x2x4xf32>
      tpu.vector_store %arg5[%c0_38, %c0_39, %c0_40], %63 {strides = array<i32>} : memref<1x2x4xf32, #tpu.memory_space<vmem>>, vector<1x2x4xf32>,
      %cst_41 = arith.constant 0.000000e+00 : f32
      %65 = vector.broadcast %cst_41 : f32 to vector<1x2x4xf32>
      %c0_42 = arith.constant 0 : index
      %c0_43 = arith.constant 0 : index
      %c0_44 = arith.constant 0 : index
      %66 = vector.load %arg6[%c0_42, %c0_43, %c0_44] : memref<1x2x4xf32, #tpu.memory_space<vmem>>, vector<1x2x4xf32>
      tpu.vector_store %arg6[%c0_42, %c0_43, %c0_44], %65 {strides = array<i32>} : memref<1x2x4xf32, #tpu.memory_space<vmem>>, vector<1x2x4xf32>,
    } else {
    }
    %c0 = arith.constant 0 : index
    %c0_1 = arith.constant 0 : index
    %c0_2 = arith.constant 0 : index
    %3 = vector.load %arg2[%c0, %c0_1, %c0_2] : memref<2x4x256xf32, #tpu.memory_space<vmem>>, vector<2x4x256xf32>
    %c0_3 = arith.constant 0 : index
    %c0_4 = arith.constant 0 : index
    %4 = vector.load %arg3[%c0_3, %c0_4] : memref<2x256xi32, #tpu.memory_space<vmem>>, vector<2x256xi32>
    %cst = arith.constant dense<0xFF800000> : vector<2x256xf32>
    %5 = vector.multi_reduction <maximumf>, %3, %cst [1] : vector<2x4x256xf32> to vector<2x256xf32>
    %6 = vector.shape_cast %5 : vector<2x256xf32> to vector<2x1x256xf32>
    %7 = vector.broadcast %6 : vector<2x1x256xf32> to vector<2x4x256xf32>
    %8 = arith.subf %3, %7 : vector<2x4x256xf32>
    %9 = math.exp %8 : vector<2x4x256xf32>
    %cst_5 = arith.constant dense<0.000000e+00> : vector<2x256xf32>
    %10 = vector.multi_reduction <add>, %9, %cst_5 [1] : vector<2x4x256xf32> to vector<2x256xf32>
    %11 = vector.shape_cast %10 : vector<2x256xf32> to vector<2x1x256xf32>
    %12 = tpu.reciprocal %11 : vector<2x1x256xf32> -> vector<2x1x256xf32>
    %13 = vector.broadcast %12 : vector<2x1x256xf32> to vector<2x4x256xf32>
    %14 = arith.mulf %9, %13 : vector<2x4x256xf32>
    %15 = tpu.iota {dimensions = array<i32: 1>} : vector<1x4x1xi32>
    %c0_i32_6 = arith.constant 0 : i32
    %16 = vector.broadcast %c0_i32_6 : i32 to vector<1x4x1xi32>
    %c0_i32_7 = arith.constant 0 : i32
    %17 = vector.broadcast %c0_i32_7 : i32 to vector<1x4x1xi32>
    %18 = arith.cmpi eq, %15, %17 : vector<1x4x1xi32>
    %c0_i32_8 = arith.constant 0 : i32
    %19 = vector.broadcast %c0_i32_8 : i32 to vector<1x4x1xi32>
    %20 = arith.select %18, %19, %16 : vector<1x4x1xi1>, vector<1x4x1xi32>
    %c1_i32 = arith.constant 1 : i32
    %21 = vector.broadcast %c1_i32 : i32 to vector<1x4x1xi32>
    %22 = arith.cmpi eq, %15, %21 : vector<1x4x1xi32>
    %c1_i32_9 = arith.constant 1 : i32
    %23 = vector.broadcast %c1_i32_9 : i32 to vector<1x4x1xi32>
    %24 = arith.select %22, %23, %20 : vector<1x4x1xi1>, vector<1x4x1xi32>
    %c2_i32 = arith.constant 2 : i32
    %25 = vector.broadcast %c2_i32 : i32 to vector<1x4x1xi32>
    %26 = arith.cmpi eq, %15, %25 : vector<1x4x1xi32>
    %c2_i32_10 = arith.constant 2 : i32
    %27 = vector.broadcast %c2_i32_10 : i32 to vector<1x4x1xi32>
    %28 = arith.select %26, %27, %24 : vector<1x4x1xi1>, vector<1x4x1xi32>
    %c3_i32 = arith.constant 3 : i32
    %29 = vector.broadcast %c3_i32 : i32 to vector<1x4x1xi32>
    %30 = arith.cmpi eq, %15, %29 : vector<1x4x1xi32>
    %c3_i32_11 = arith.constant 3 : i32
    %31 = vector.broadcast %c3_i32_11 : i32 to vector<1x4x1xi32>
    %32 = arith.select %30, %31, %28 : vector<1x4x1xi1>, vector<1x4x1xi32>
    %33 = vector.shape_cast %4 : vector<2x256xi32> to vector<2x1x256xi32>
    %34 = vector.broadcast %33 : vector<2x1x256xi32> to vector<2x4x256xi32>
    %35 = vector.broadcast %32 : vector<1x4x1xi32> to vector<2x4x256xi32>
    %36 = arith.cmpi eq, %34, %35 : vector<2x4x256xi32>
    %37 = arith.extui %36 : vector<2x4x256xi1> to vector<2x4x256xi32>
    %38 = arith.sitofp %37 : vector<2x4x256xi32> to vector<2x4x256xf32>
    %39 = arith.mulf %14, %38 : vector<2x4x256xf32>
    %cst_12 = arith.constant dense<0.000000e+00> : vector<2x4xf32>
    %40 = vector.multi_reduction <add>, %39, %cst_12 [2] : vector<2x4x256xf32> to vector<2x4xf32>
    %cst_13 = arith.constant dense<0.000000e+00> : vector<2x4xf32>
    %41 = vector.multi_reduction <add>, %14, %cst_13 [2] : vector<2x4x256xf32> to vector<2x4xf32>
    %cst_14 = arith.constant dense<0.000000e+00> : vector<2x4xf32>
    %42 = vector.multi_reduction <add>, %38, %cst_14 [2] : vector<2x4x256xf32> to vector<2x4xf32>
    %c0_15 = arith.constant 0 : index
    %c0_16 = arith.constant 0 : index
    %c0_17 = arith.constant 0 : index
    %43 = vector.load %arg4[%c0_15, %c0_16, %c0_17] : memref<1x2x4xf32, #tpu.memory_space<vmem>>, vector<1x2x4xf32>
    %44 = vector.shape_cast %43 : vector<1x2x4xf32> to vector<2x4xf32>
    %45 = arith.addf %44, %40 : vector<2x4xf32>
    %c0_18 = arith.constant 0 : index
    %c0_19 = arith.constant 0 : index
    %c0_20 = arith.constant 0 : index
    %46 = vector.load %arg4[%c0_18, %c0_19, %c0_20] : memref<1x2x4xf32, #tpu.memory_space<vmem>>, vector<1x2x4xf32>
    %47 = vector.shape_cast %46 : vector<1x2x4xf32> to vector<2x4xf32>
    %48 = vector.shape_cast %45 : vector<2x4xf32> to vector<1x2x4xf32>
    tpu.vector_store %arg4[%c0_18, %c0_19, %c0_20], %48 {strides = array<i32>} : memref<1x2x4xf32, #tpu.memory_space<vmem>>, vector<1x2x4xf32>,
    %c0_21 = arith.constant 0 : index
    %c0_22 = arith.constant 0 : index
    %c0_23 = arith.constant 0 : index
    %49 = vector.load %arg5[%c0_21, %c0_22, %c0_23] : memref<1x2x4xf32, #tpu.memory_space<vmem>>, vector<1x2x4xf32>
    %50 = vector.shape_cast %49 : vector<1x2x4xf32> to vector<2x4xf32>
    %51 = arith.addf %50, %41 : vector<2x4xf32>
    %c0_24 = arith.constant 0 : index
    %c0_25 = arith.constant 0 : index
    %c0_26 = arith.constant 0 : index
    %52 = vector.load %arg5[%c0_24, %c0_25, %c0_26] : memref<1x2x4xf32, #tpu.memory_space<vmem>>, vector<1x2x4xf32>
    %53 = vector.shape_cast %52 : vector<1x2x4xf32> to vector<2x4xf32>
    %54 = vector.shape_cast %51 : vector<2x4xf32> to vector<1x2x4xf32>
    tpu.vector_store %arg5[%c0_24, %c0_25, %c0_26], %54 {strides = array<i32>} : memref<1x2x4xf32, #tpu.memory_space<vmem>>, vector<1x2x4xf32>,
    %c0_27 = arith.constant 0 : index
    %c0_28 = arith.constant 0 : index
    %c0_29 = arith.constant 0 : index
    %55 = vector.load %arg6[%c0_27, %c0_28, %c0_29] : memref<1x2x4xf32, #tpu.memory_space<vmem>>, vector<1x2x4xf32>
    %56 = vector.shape_cast %55 : vector<1x2x4xf32> to vector<2x4xf32>
    %57 = arith.addf %56, %42 : vector<2x4xf32>
    %c0_30 = arith.constant 0 : index
    %c0_31 = arith.constant 0 : index
    %c0_32 = arith.constant 0 : index
    %58 = vector.load %arg6[%c0_30, %c0_31, %c0_32] : memref<1x2x4xf32, #tpu.memory_space<vmem>>, vector<1x2x4xf32>
    %59 = vector.shape_cast %58 : vector<1x2x4xf32> to vector<2x4xf32>
    %60 = vector.shape_cast %57 : vector<2x4xf32> to vector<1x2x4xf32>
    tpu.vector_store %arg6[%c0_30, %c0_31, %c0_32], %60 {strides = array<i32>} : memref<1x2x4xf32, #tpu.memory_space<vmem>>, vector<1x2x4xf32>,
    return
  }
  func.func @transform_0(%arg0: i32, %arg1: i32) -> (i32, i32, i32) {
    %c1_i32 = arith.constant 1 : i32
    %0 = arith.muli %arg0, %c1_i32 : i32
    %1 = arith.addi %0, %arg1 : i32
    %c0_i32 = arith.constant 0 : i32
    %c0_i32_0 = arith.constant 0 : i32
    %c0_i32_1 = arith.constant 0 : i32
    return %c0_i32, %c0_i32_0, %1 : i32, i32, i32
  }
  func.func @transform_1(%arg0: i32, %arg1: i32) -> (i32, i32) {
    %c1_i32 = arith.constant 1 : i32
    %0 = arith.muli %arg0, %c1_i32 : i32
    %1 = arith.addi %0, %arg1 : i32
    %c0_i32 = arith.constant 0 : i32
    %c0_i32_0 = arith.constant 0 : i32
    return %c0_i32, %1 : i32, i32
  }
  func.func @transform_2(%arg0: i32, %arg1: i32) -> (i32, i32, i32) {
    %c0_i32 = arith.constant 0 : i32
    %c0_i32_0 = arith.constant 0 : i32
    %c0_i32_1 = arith.constant 0 : i32
    return %arg0, %c0_i32, %c0_i32_0 : i32, i32, i32
  }
  func.func @transform_3(%arg0: i32, %arg1: i32) -> (i32, i32, i32) {
    %c0_i32 = arith.constant 0 : i32
    %c0_i32_0 = arith.constant 0 : i32
    %c0_i32_1 = arith.constant 0 : i32
    return %arg0, %c0_i32, %c0_i32_0 : i32, i32, i32
  }
  func.func @transform_4(%arg0: i32, %arg1: i32) -> (i32, i32, i32) {
    %c0_i32 = arith.constant 0 : i32
    %c0_i32_0 = arith.constant 0 : i32
    %c0_i32_1 = arith.constant 0 : i32
    return %arg0, %c0_i32, %c0_i32_0 : i32, i32, i32
  }
}

</mosaic_0001>

<llo_original>
// kernel: tpu_custom_call.1
$region0: #{tpu_custom_call.1}
  #allocation0 [shape = 'u32[]', space=smem, size = 0x4, offset = 0x4, fixed_abs, tag = 'smem constant byte address 0x4 - core index']
  #allocation1 [shape = 'u32[144,128]{1,0:T(1,128)}', space=vmem, size = 0x12000, scoped, tag = 'internal scratch']
  %s0 = inlined_call_operand.hbm [shape: f32[2,4,256], index: 0, kind: input, shape index: {}]
  %s1 = inlined_call_operand.hbm [shape: s32[2,256], index: 1, kind: input, shape index: {}]
  %s2 = inlined_call_operand.hbm [shape: f32[1,2,4], index: 2, kind: output, shape index: {0}]
  %s3 = inlined_call_operand.hbm [shape: f32[1,2,4], index: 3, kind: output, shape index: {1}]
  %s4 = inlined_call_operand.hbm [shape: f32[1,2,4], index: 4, kind: output, shape index: {2}]
  %5 = xla_tuple %s2, %s3, %s4
  %s6 = sld [smem:[#allocation0]]
  $region46: #{tpu_custom_call.1} parent=0
    _
  %s8 = ssub.s32 1, %s6
  %s9 = scalar_select 0, %s8, %s6
  $region1: #{tpu_custom_call.1} parent=0
    #allocation2 [shape = 'u8[8192]{0}', space=vmem, size = 0x2000, scoped, tag = 'input window, operand 0, single buffered']
    #allocation3 [shape = 's32[1]{0}', space=sflag, size = 0x4, scoped, tag = 'scoped memory for tpu_custom_call.1']
    #allocation4 [shape = 's32[1]{0}', space=sflag, size = 0x4, scoped, tag = 'scoped memory for tpu_custom_call.1']
    #allocation5 [shape = 'u8[2048]{0}', space=vmem, size = 0x800, scoped, tag = 'input window, operand 1, single buffered']
    #allocation6 [shape = 's32[1]{0}', space=sflag, size = 0x4, scoped, tag = 'scoped memory for tpu_custom_call.1']
    #allocation7 [shape = 'u8[1024]{0}', space=vmem, size = 0x400, scoped, tag = 'output window, operand 0, single buffered']
    #allocation8 [shape = 'u8[1024]{0}', space=vmem, size = 0x400, scoped, tag = 'output window, operand 1, single buffered']
    #allocation9 [shape = 's32[1]{0}', space=sflag, size = 0x4, scoped, tag = 'scoped memory for tpu_custom_call.1']
    #allocation10 [shape = 'u8[1024]{0}', space=vmem, size = 0x400, scoped, tag = 'output window, operand 2, single buffered']
    %10 = vsyncpa [#allocation3], 0
    %11 = vsyncpa [#allocation6], 0
    %12 = vsyncpa [#allocation4], 0
    %13 = vsyncpa [#allocation9], 0
    // Predicated region
    $region2: #{tpu_custom_call.1} parent=1 // pred_check
      _
    $region3: #{tpu_custom_call.1} parent=1 // pred_check_branch
      %15 = sbr.rel (0) target = $region5
    $region4: #{tpu_custom_call.1} parent=1 // pred_region
      %s16 = sadd.s32 0, 0
      %s17 = smul.u32 2, %s16
      %s19 = ssub.s32 256, 256
      %20 = vsyncadd [#allocation3], %s19
      %s21 = smul.addr %s17, 64
      %s22 = scalar_lea.hbm %s0, %s21
      %s23 = sshll.u32 [#allocation2], 4
      %s24 = int_to_ptr.vmem [resolvable:$true] %s23
      %29 = dma.hbm_to_vmem [thread:$0]  %s22, 256, %s24, [#allocation3], 128, 128, 8
    $region5: #{tpu_custom_call.1} parent=1 // pred_fallthru
      _
    // Predicated region
    $region6: #{tpu_custom_call.1} parent=1 // pred_check
      _
    $region7: #{tpu_custom_call.1} parent=1 // pred_check_branch
      %31 = sbr.rel (0) target = $region9
    $region8: #{tpu_custom_call.1} parent=1 // pred_region
      %s32 = sadd.s32 0, 0
      %s33 = smul.u32 2, %s32
      %s35 = ssub.s32 64, 64
      %36 = vsyncadd [#allocation6], %s35
      %s37 = smul.addr %s33, 32
      %s38 = scalar_lea.hbm %s1, %s37
      %s40 = sshll.u32 [#allocation5], 4
      %s41 = int_to_ptr.vmem [resolvable:$true] %s40
      %43 = dma.hbm_to_vmem [thread:$0]  %s38, 64, %s41, [#allocation6]
    $region9: #{tpu_custom_call.1} parent=1 // pred_fallthru
      _
    // Predicated region
    $region10: #{tpu_custom_call.1} parent=1 // pred_check
      _
    $region11: #{tpu_custom_call.1} parent=1 // pred_check_branch
      %45 = sbr.rel (0) target = $region13
    $region12: #{tpu_custom_call.1} parent=1 // pred_region
      %46 = dma.done [#allocation3], 256
    $region13: #{tpu_custom_call.1} parent=1 // pred_fallthru
      _
    // Predicated region
    $region14: #{tpu_custom_call.1} parent=1 // pred_check
      _
    $region15: #{tpu_custom_call.1} parent=1 // pred_check_branch
      %48 = sbr.rel (0) target = $region17
    $region16: #{tpu_custom_call.1} parent=1 // pred_region
      %49 = dma.done [#allocation6], 64
    $region17: #{tpu_custom_call.1} parent=1 // pred_fallthru
      _
    %s50 = sadd.s32 0, 0
    %s51 = smul.u32 2, %s50
    %s52 = sadd.s32 0, 0
    %s53 = smul.u32 2, %s52
    %p54 = scmp.eq.s32.totalorder 0, 0
    // Predicated region
    $region18: #{tpu_custom_call.1} parent=1 // pred_check
      %p55 = pneg %p54
    $region19: #{tpu_custom_call.1} parent=1 // pred_check_branch
      %57 = sbr.rel (%p55) target = $region21
    $region20: #{tpu_custom_call.1} parent=1 // pred_region
      %vm58 = vcmask 25600
      %59 = vst.msk [vmem:[#allocation7] sm:$0x3] %vm58, 0.0
      %60 = vst.msk [vmem:[#allocation8] sm:$0x3] %vm58, 0.0
      %61 = vst.msk [vmem:[#allocation10] sm:$0x3] %vm58, 0.0
    $region21: #{tpu_custom_call.1} parent=1 // pred_fallthru
      _
    %v62 = vld [vmem:[#allocation2] sm:$0xff]
    %v63 = vld [vmem:[#allocation2 + $0x8] sm:$0xff]
    %v64 = vld [vmem:[#allocation5] sm:$0xf]
    %v67 = vcombine.high %v62, %v62
    %v68 = vcombine.high %v63, %v63
    %vm71 = vcmask 1043456
    %v72 = vsel %vm71, %v62, -inf
    %v73 = vrot.slane %v72, 4
    %v74 = vmax.f32 %v72, %v73
    %v75 = vrot.slane %v74, 2
    %v76 = vmax.f32 %v74, %v75
    %v77 = vrot.slane %v76, 1
    %v78 = vmax.f32 %v76, %v77
    %v79 = vsel %vm71, %v67, -inf
    %v80 = vrot.slane %v79, 4
    %v81 = vmax.f32 %v79, %v80
    %v82 = vrot.slane %v81, 2
    %v83 = vmax.f32 %v81, %v82
    %v84 = vrot.slane %v83, 1
    %v85 = vmax.f32 %v83, %v84
    %v86 = vsel %vm71, %v63, -inf
    %v87 = vrot.slane %v86, 4
    %v88 = vmax.f32 %v86, %v87
    %v89 = vrot.slane %v88, 2
    %v90 = vmax.f32 %v88, %v89
    %v91 = vrot.slane %v90, 1
    %v92 = vmax.f32 %v90, %v91
    %v93 = vsel %vm71, %v68, -inf
    %v94 = vrot.slane %v93, 4
    %v95 = vmax.f32 %v93, %v94
    %v96 = vrot.slane %v95, 2
    %v97 = vmax.f32 %v95, %v96
    %v98 = vrot.slane %v97, 1
    %v99 = vmax.f32 %v97, %v98
    %v104 = vcombine.low %v78, %v85
    %v105 = vcombine.low %v92, %v99
    %v108 = vsub.f32 %v62, %v104
    %v109 = vsub.f32 %v63, %v105
    %v110 = vmul.f32 %v108, 1.442695
    %v111 = vpow.pop %v110
    %v112 = vmul.f32 %v109, 1.442695
    %v113 = vpow.pop %v112
    %v116 = vcombine.high %v111, %v111
    %v117 = vcombine.high %v113, %v113
    %v120 = vsel %vm71, %v111, 0.0
    %v121 = vrot.slane %v120, 4
    %v122 = vadd.f32 %v120, %v121
    %v123 = vrot.slane %v122, 2
    %v124 = vadd.f32 %v122, %v123
    %v125 = vrot.slane %v124, 1
    %v126 = vadd.f32 %v124, %v125
    %v127 = vsel %vm71, %v116, 0.0
    %v128 = vrot.slane %v127, 4
    %v129 = vadd.f32 %v127, %v128
    %v130 = vrot.slane %v129, 2
    %v131 = vadd.f32 %v129, %v130
    %v132 = vrot.slane %v131, 1
    %v133 = vadd.f32 %v131, %v132
    %v134 = vsel %vm71, %v113, 0.0
    %v135 = vrot.slane %v134, 4
    %v136 = vadd.f32 %v134, %v135
    %v137 = vrot.slane %v136, 2
    %v138 = vadd.f32 %v136, %v137
    %v139 = vrot.slane %v138, 1
    %v140 = vadd.f32 %v138, %v139
    %v141 = vsel %vm71, %v117, 0.0
    %v142 = vrot.slane %v141, 4
    %v143 = vadd.f32 %v141, %v142
    %v144 = vrot.slane %v143, 2
    %v145 = vadd.f32 %v143, %v144
    %v146 = vrot.slane %v145, 1
    %v147 = vadd.f32 %v145, %v146
    %v148 = vrcp.pop %v126
    %v149 = vrcp.pop %v133
    %v150 = vrcp.pop %v140
    %v151 = vrcp.pop %v147
    %v156 = vcombine.low %v148, %v149
    %v157 = vcombine.low %v150, %v151
    %v160 = vmul.f32 %v111, %v156
    %v161 = vmul.f32 %v113, %v157
    %v162 = vlaneseq
    %v163 = vshrl.u32 %v162, 7
    %vm164 = vcmp.eq.s32.totalorder %v163, 1
    %v165 = vsel %vm164, 1, 0
    %vm166 = vcmp.eq.s32.totalorder %v163, 2
    %v167 = vsel %vm166, 2, %v165
    %vm168 = vcmp.eq.s32.totalorder %v163, 3
    %v169 = vsel %vm168, 3, %v167
    %v171 = vunpack.c.l.s4 1966171168
    %v172 = vunpack.c.0.s8 %v171
    %v173 = vlaneseq
    %v174 = vshrl.u32 %v173, 7
    %v175 = vsub.s32 %v172, %v174
    %v176 = vrot.slane %v64, %v175
    %v177 = vcombine.high %v176, %v176
    %v178 = vlaneseq
    %v179 = vshrl.u32 %v178, 7
    %v180 = vsub.s32 0, %v179
    %v181 = vrot.slane %v176, %v180
    %v182 = vlaneseq
    %v183 = vshrl.u32 %v182, 7
    %v184 = vsub.s32 1, %v183
    %v185 = vrot.slane %v176, %v184
    %v186 = vlaneseq
    %v187 = vshrl.u32 %v186, 7
    %v188 = vsub.s32 0, %v187
    %v189 = vrot.slane %v177, %v188
    %v190 = vlaneseq
    %v191 = vshrl.u32 %v190, 7
    %v192 = vsub.s32 1, %v191
    %v193 = vrot.slane %v177, %v192
    %vm194 = vcmp.eq.s32.totalorder %v181, %v169
    %vm195 = vcmp.eq.s32.totalorder %v185, %v169
    %vm196 = vcmp.eq.s32.totalorder %v189, %v169
    %vm197 = vcmp.eq.s32.totalorder %v193, %v169
    %v198 = vsel %vm194, 1, 0
    %v199 = vsel %vm195, 1, 0
    %v200 = vsel %vm196, 1, 0
    %v201 = vsel %vm197, 1, 0
    %v202 = vcvt.s32.f32 %v198
    %v203 = vcvt.s32.f32 %v199
    %v204 = vcvt.s32.f32 %v200
    %v205 = vcvt.s32.f32 %v201
    %v210 = vcombine.low %v202, %v203
    %v211 = vcombine.low %v204, %v205
    %v214 = vmul.f32 %v160, %v210
    %v215 = vmul.f32 %v161, %v211
    %v218 = vcombine.high %v214, %v214
    %v219 = vcombine.high %v215, %v215
    %v222 = vsel %vm71, %v214, 0.0
    %v223 = vsel %vm71, %v218, 0.0
    %v224 = vadd.f32 %v222, %v223
    %225 = vadd.xlane.f32.xlu0 %v224
    %v226 = vpop.xlane.xlu0 %225
    %v227 = vsel %vm71, %v215, 0.0
    %v228 = vsel %vm71, %v219, 0.0
    %v229 = vadd.f32 %v227, %v228
    %230 = vadd.xlane.f32.xlu0 %v229
    %v231 = vpop.xlane.xlu0 %230
    %v234 = vcombine.high %v160, %v160
    %v235 = vcombine.high %v161, %v161
    %v238 = vsel %vm71, %v160, 0.0
    %v239 = vsel %vm71, %v234, 0.0
    %v240 = vadd.f32 %v238, %v239
    %241 = vadd.xlane.f32.xlu0 %v240
    %v242 = vpop.xlane.xlu0 %241
    %v243 = vsel %vm71, %v161, 0.0
    %v244 = vsel %vm71, %v235, 0.0
    %v245 = vadd.f32 %v243, %v244
    %246 = vadd.xlane.f32.xlu0 %v245
    %v247 = vpop.xlane.xlu0 %246
    %v248 = vsel %vm71, %v202, 0.0
    %v249 = vsel %vm71, %v203, 0.0
    %v250 = vadd.f32 %v248, %v249
    %251 = vadd.xlane.f32.xlu0 %v250
    %v252 = vpop.xlane.xlu0 %251
    %v253 = vsel %vm71, %v204, 0.0
    %v254 = vsel %vm71, %v205, 0.0
    %v255 = vadd.f32 %v253, %v254
    %256 = vadd.xlane.f32.xlu0 %v255
    %v257 = vpop.xlane.xlu0 %256
    %v258 = vld [vmem:[#allocation7] sm:$0x3]
    %v261 = vlaneseq
    %v262 = vand.u32 %v261, 127
    %v263 = vlaneseq
    %v264 = vshrl.u32 %v263, 7
    %v265 = vsub.s32 %v262, %v264
    %v266 = vrot.slane %v226, %v265
    %v267 = vlaneseq
    %v268 = vshrl.u32 %v267, 7
    %v269 = vsub.s32 %v262, %v268
    %v270 = vrot.slane %v231, %v269
    %vm271 = vcmask 1041409
    %v272 = vsel %vm271, %v270, %v266
    %v274 = vadd.f32 %v258, %v272
    %vm275 = vcmask 25600
    %276 = vst.msk [vmem:[#allocation7] sm:$0x3] %vm275, %v274
    %v277 = vld [vmem:[#allocation8] sm:$0x3]
    %v280 = vlaneseq
    %v281 = vshrl.u32 %v280, 7
    %v282 = vsub.s32 %v262, %v281
    %v283 = vrot.slane %v242, %v282
    %v284 = vlaneseq
    %v285 = vshrl.u32 %v284, 7
    %v286 = vsub.s32 %v262, %v285
    %v287 = vrot.slane %v247, %v286
    %v288 = vsel %vm271, %v287, %v283
    %v290 = vadd.f32 %v277, %v288
    %291 = vst.msk [vmem:[#allocation8] sm:$0x3] %vm275, %v290
    %v292 = vld [vmem:[#allocation10] sm:$0x3]
    %v295 = vlaneseq
    %v296 = vshrl.u32 %v295, 7
    %v297 = vsub.s32 %v262, %v296
    %v298 = vrot.slane %v252, %v297
    %v299 = vlaneseq
    %v300 = vshrl.u32 %v299, 7
    %v301 = vsub.s32 %v262, %v300
    %v302 = vrot.slane %v257, %v301
    %v303 = vsel %vm271, %v302, %v298
    %v305 = vadd.f32 %v292, %v303
    %306 = vst.msk [vmem:[#allocation10] sm:$0x3] %vm275, %v305
    // Predicated region
    $region22: #{tpu_custom_call.1} parent=1 // pred_check
      _
    $region23: #{tpu_custom_call.1} parent=1 // pred_check_branch
      %308 = sbr.rel (0) target = $region25
    $region24: #{tpu_custom_call.1} parent=1 // pred_region
      %s310 = ssub.s32 32, 32
      %311 = vsyncadd [#allocation4], %s310
      %s313 = sshll.u32 [#allocation7], 4
      %s314 = int_to_ptr.vmem [resolvable:$true] %s313
      %316 = dma.vmem_to_hbm [thread:$0]  %s314, 32, %s2, [#allocation4]
    $region25: #{tpu_custom_call.1} parent=1 // pred_fallthru
      _
    // Predicated region
    $region26: #{tpu_custom_call.1} parent=1 // pred_check
      _
    $region27: #{tpu_custom_call.1} parent=1 // pred_check_branch
      %318 = sbr.rel (0) target = $region29
    $region28: #{tpu_custom_call.1} parent=1 // pred_region
      %s320 = ssub.s32 32, 32
      %321 = vsyncadd [#allocation9], %s320
      %s323 = sshll.u32 [#allocation8], 4
      %s324 = int_to_ptr.vmem [resolvable:$true] %s323
      %326 = dma.vmem_to_hbm [thread:$0]  %s324, 32, %s3, [#allocation9]
    $region29: #{tpu_custom_call.1} parent=1 // pred_fallthru
      _
    // Predicated region
    $region30: #{tpu_custom_call.1} parent=1 // pred_check
      _
    $region31: #{tpu_custom_call.1} parent=1 // pred_check_branch
      %328 = sbr.rel (0) target = $region33
    $region32: #{tpu_custom_call.1} parent=1 // pred_region
      %s330 = ssub.s32 32, 32
      %331 = vsyncadd [#allocation9], %s330
      %s333 = sshll.u32 [#allocation10], 4
      %s334 = int_to_ptr.vmem [resolvable:$true] %s333
      %336 = dma.vmem_to_hbm [thread:$0]  %s334, 32, %s4, [#allocation9]
    $region33: #{tpu_custom_call.1} parent=1 // pred_fallthru
      _
    // Predicated region
    $region34: #{tpu_custom_call.1} parent=1 // pred_check
      _
    $region35: #{tpu_custom_call.1} parent=1 // pred_check_branch
      %338 = sbr.rel (0) target = $region37
    $region36: #{tpu_custom_call.1} parent=1 // pred_region
      %339 = dma.done [#allocation4], 32
    $region37: #{tpu_custom_call.1} parent=1 // pred_fallthru
      _
    // Predicated region
    $region38: #{tpu_custom_call.1} parent=1 // pred_check
      _
    $region39: #{tpu_custom_call.1} parent=1 // pred_check_branch
      %341 = sbr.rel (0) target = $region41
    $region40: #{tpu_custom_call.1} parent=1 // pred_region
      %342 = dma.done [#allocation9], 32
    $region41: #{tpu_custom_call.1} parent=1 // pred_fallthru
      _
    // Predicated region
    $region42: #{tpu_custom_call.1} parent=1 // pred_check
      _
    $region43: #{tpu_custom_call.1} parent=1 // pred_check_branch
      %344 = sbr.rel (0) target = $region45
    $region44: #{tpu_custom_call.1} parent=1 // pred_region
      %345 = dma.done [#allocation9], 32
    $region45: #{tpu_custom_call.1} parent=1 // pred_fallthru
      _
    %346 = vsyncpa [#allocation3], 1
    %347 = vsyncpa [#allocation6], 1
    %348 = vsyncpa [#allocation4], 1
    %349 = vsyncpa [#allocation9], 1

</llo_original>
